<compile_context>
chip_gen: v6e
topology: v6e:2x2x1
jax: 0.10.0
libtpu: 0.0.40
codegen_flags: <defaults>
</compile_context>

<pallas_src>
import math

import jax
import jax.numpy as jnp
from jax.experimental import pallas as pl
from jax.experimental.pallas import tpu as pltpu


# ----------------------------- Pallas kernel -----------------------------

def add_pe_kernel(x_ref, pe_ref, o_ref):
    # x_ref/o_ref: (TS, D) (batch squeezed) or (B, TS, D) (batch folded into the block).
    # pe_ref:      (TS, D) -- broadcasts over the leading batch dim when present.
    o_ref[...] = (x_ref[...] + pe_ref[...]).astype(o_ref.dtype)


# ----------------------------- wrapper -----------------------------

def _sublane_multiple(dtype):
    """Packing multiple for the second-to-last dim: 8 (32-bit), 16 (16-bit), 32 (8-bit)."""
    bits = jnp.dtype(dtype).itemsize * 8
    return max(8, 256 // bits)


def _round_up(n, m):
    return ((n + m - 1) // m) * m


def _pick_tile_rows(total_rows, bytes_per_row, sub, target_bytes, max_rows=4096):
    """Largest sublane-aligned row count whose tile is ~target_bytes (clamped)."""
    ts = max(target_bytes // max(bytes_per_row, 1), sub)
    ts = (ts // sub) * sub
    ts = min(ts, max_rows)
    ts = min(ts, _round_up(total_rows, sub))   # never bigger than the (padded) extent
    return max(ts, sub)


def positional_encoding(x, pe, *, target_bytes=2 << 20, vmem_budget=40 << 20):
    """x: (B, S, D) activations; pe: (max_len, D) precomputed PE buffer (f32)."""
    B, S, D = x.shape
    max_len, d_model = pe.shape
    assert d_model == D, "pe d_model must match x"
    assert S <= max_len, "sequence longer than the PE buffer"

    dsize = jnp.dtype(x.dtype).itemsize
    sub = _sublane_multiple(x.dtype)
    row_bytes = D * dsize
    x_bytes = B * S * row_bytes

    pe_s = pe[:S].astype(x.dtype)               # static slice == pe[:, :x.size(1)], dtype-matched

    # Small-tensor regime: fold batch into the block to amortize the ~0.35us/step overhead.
    fold_batch = (x_bytes * 5 <= vmem_budget) and (x_bytes <= 4 * target_bytes)

    if fold_batch:
        TS = _pick_tile_rows(S, B * row_bytes, sub, target_bytes)
        grid = (pl.cdiv(S, TS),)
        in_specs = [
            pl.BlockSpec((B, TS, D), lambda s: (0, s, 0)),
            pl.BlockSpec((TS, D), lambda s: (s, 0)),
        ]
        out_specs = pl.BlockSpec((B, TS, D), lambda s: (0, s, 0))
        dims = ("parallel",)
        x_tile_bytes = B * TS * row_bytes
    else:
        TS = _pick_tile_rows(S, row_bytes, sub, target_bytes)
        # Seq tiles outer, batch inner: PE block index is constant across batch -> resident.
        grid = (pl.cdiv(S, TS), B)
        in_specs = [
            pl.BlockSpec((None, TS, D), lambda s, b: (b, s, 0)),
            pl.BlockSpec((TS, D), lambda s, b: (s, 0)),
        ]
        out_specs = pl.BlockSpec((None, TS, D), lambda s, b: (b, s, 0))
        dims = ("parallel", "parallel")          # both axes independent -> megacore-friendly
        x_tile_bytes = TS * row_bytes

    # Double-buffered x + out + pe; keep well under the per-generation scoped limits.
    pe_tile_bytes = TS * row_bytes
    est_vmem = 2 * x_tile_bytes + 2 * x_tile_bytes + 2 * pe_tile_bytes
    assert est_vmem <= vmem_budget, "tile selection exceeds VMEM budget"
    vmem_limit = int(min(max(2 * est_vmem, 16 << 20), 64 << 20))

    return pl.pallas_call(
        add_pe_kernel,
        out_shape=jax.ShapeDtypeStruct((B, S, D), x.dtype),
        grid_spec=pltpu.PrefetchScalarGridSpec(
            num_scalar_prefetch=0,
            grid=grid,
            in_specs=in_specs,
            out_specs=out_specs,
        ),
        compiler_params=pltpu.CompilerParams(
            dimension_semantics=dims,
            vmem_limit_bytes=vmem_limit),
    )(x, pe_s)


def make_pe(max_len, d_model, dtype=jnp.float32):
    """Exact reproduction of the torch buffer built in PositionalEncoding.__init__."""
    assert d_model % 2 == 0, "d_model must be even (same limitation as the torch module)"
    position = jnp.arange(max_len, dtype=jnp.float32)[:, None]             # (L, 1)
    div_term = jnp.exp(jnp.arange(0, d_model, 2, dtype=jnp.float32)
                       * -(math.log(10000.0) / d_model))                   # (D/2,)
    angles = position * div_term                                           # (L, D/2)
    pe = jnp.zeros((max_len, d_model), dtype=jnp.float32)
    pe = pe.at[:, 0::2].set(jnp.sin(angles))
    pe = pe.at[:, 1::2].set(jnp.cos(angles))
    return pe.astype(dtype)


# ----------------------------- demo / self-check -----------------------------

if __name__ == "__main__":
    MAX_LEN = 5000
    D = 128
    key = jax.random.PRNGKey(0)
    k1, k2 = jax.random.split(key)

    pe = make_pe(MAX_LEN, D)

    # Case 1: f32, small tensor -> folded-batch single-axis grid.
    B, S = 2, 16
    x = jax.random.normal(k1, (B, S, D), dtype=jnp.float32)
    out = jax.block_until_ready(positional_encoding(x, pe))
    ref = x + pe[None, :S, :]
    assert out.shape == (B, S, D)
    assert bool(jnp.all(jnp.isfinite(out)))
    assert bool(jnp.allclose(out, ref, atol=1e-6, rtol=1e-6))

    # Case 2: bf16, forced (seq, batch) grid with a cdiv partial last seq tile.
    B2, S2 = 3, 48
    x2 = jax.random.normal(k2, (B2, S2, D), dtype=jnp.bfloat16)
    out2 = jax.block_until_ready(positional_encoding(x2, pe, target_bytes=8 * 1024))
    ref2 = x2 + pe[None, :S2, :].astype(jnp.bfloat16)
    assert out2.shape == (B2, S2, D)
    assert bool(jnp.allclose(out2.astype(jnp.float32), ref2.astype(jnp.float32),
                             atol=2e-2, rtol=2e-2))

    print("KERNEL_OK")
</pallas_src>

<mosaic_0001>
module attributes {stable_mosaic.version = 11 : i64} {
  func.func @add_pe_kernel(%arg0: i32, %arg1: memref<2x16x128xf32, #tpu.memory_space<vmem>>, %arg2: memref<16x128xf32, #tpu.memory_space<vmem>>, %arg3: memref<2x16x128xf32, #tpu.memory_space<vmem>>) attributes {dimension_semantics = [#tpu.dimension_semantics<parallel>], iteration_bounds = array<i64: 1>, scalar_prefetch = 0 : i64, scratch_operands = 0 : i64, tpu.core_type = #tpu.core_type<tc>, window_params = [{transform_indices = @transform_0, window_bounds = array<i64: 2, 16, 128>}, {transform_indices = @transform_1, window_bounds = array<i64: 16, 128>}, {transform_indices = @transform_2, window_bounds = array<i64: 2, 16, 128>}]} {
    %c0 = arith.constant 0 : index
    %c0_0 = arith.constant 0 : index
    %c0_1 = arith.constant 0 : index
    %0 = vector.load %arg1[%c0, %c0_0, %c0_1] : memref<2x16x128xf32, #tpu.memory_space<vmem>>, vector<2x16x128xf32>
    %c0_2 = arith.constant 0 : index
    %c0_3 = arith.constant 0 : index
    %1 = vector.load %arg2[%c0_2, %c0_3] : memref<16x128xf32, #tpu.memory_space<vmem>>, vector<16x128xf32>
    %2 = vector.shape_cast %1 : vector<16x128xf32> to vector<1x16x128xf32>
    %3 = vector.broadcast %2 : vector<1x16x128xf32> to vector<2x16x128xf32>
    %4 = arith.addf %0, %3 : vector<2x16x128xf32>
    %c0_4 = arith.constant 0 : index
    %c0_5 = arith.constant 0 : index
    %c0_6 = arith.constant 0 : index
    %5 = vector.load %arg3[%c0_4, %c0_5, %c0_6] : memref<2x16x128xf32, #tpu.memory_space<vmem>>, vector<2x16x128xf32>
    tpu.vector_store %arg3[%c0_4, %c0_5, %c0_6], %4 {strides = array<i32>} : memref<2x16x128xf32, #tpu.memory_space<vmem>>, vector<2x16x128xf32>,
    return
  }
  func.func @transform_0(%arg0: i32) -> (i32, i32, i32) {
    %c0_i32 = arith.constant 0 : i32
    %c0_i32_0 = arith.constant 0 : i32
    %c0_i32_1 = arith.constant 0 : i32
    return %c0_i32, %arg0, %c0_i32_0 : i32, i32, i32
  }
  func.func @transform_1(%arg0: i32) -> (i32, i32) {
    %c0_i32 = arith.constant 0 : i32
    %c0_i32_0 = arith.constant 0 : i32
    return %arg0, %c0_i32 : i32, i32
  }
  func.func @transform_2(%arg0: i32) -> (i32, i32, i32) {
    %c0_i32 = arith.constant 0 : i32
    %c0_i32_0 = arith.constant 0 : i32
    %c0_i32_1 = arith.constant 0 : i32
    return %c0_i32, %arg0, %c0_i32_0 : i32, i32, i32
  }
}

</mosaic_0001>

<llo_original>
// kernel: tpu_custom_call.1
$region0: #{tpu_custom_call.1}
  #allocation0 [shape = 'u32[]', space=smem, size = 0x4, offset = 0x4, fixed_abs, tag = 'smem constant byte address 0x4 - core index']
  #allocation1 [shape = 'u32[144,128]{1,0:T(1,128)}', space=vmem, size = 0x12000, scoped, tag = 'internal scratch']
  %s0 = inlined_call_operand.hbm [shape: f32[2,16,128], index: 0, kind: input, shape index: {}]
  %s1 = inlined_call_operand.hbm [shape: f32[16,128], index: 1, kind: input, shape index: {}]
  %s2 = inlined_call_operand.hbm [shape: f32[2,16,128], index: 2, kind: output, shape index: {}]
  %s3 = sld [smem:[#allocation0]]
  $region26: #{tpu_custom_call.1} parent=0
    _
  %s5 = ssub.s32 1, %s3
  %s6 = scalar_select 0, %s5, %s3
  $region1: #{tpu_custom_call.1} parent=0
    #allocation2 [shape = 'u8[16384]{0}', space=vmem, size = 0x4000, scoped, tag = 'input window, operand 0, single buffered']
    #allocation3 [shape = 's32[1]{0}', space=sflag, size = 0x4, scoped, tag = 'scoped memory for tpu_custom_call.1']
    #allocation4 [shape = 's32[1]{0}', space=sflag, size = 0x4, scoped, tag = 'scoped memory for tpu_custom_call.1']
    #allocation5 [shape = 'u8[8192]{0}', space=vmem, size = 0x2000, scoped, tag = 'input window, operand 1, single buffered']
    #allocation6 [shape = 's32[1]{0}', space=sflag, size = 0x4, scoped, tag = 'scoped memory for tpu_custom_call.1']
    #allocation7 [shape = 'u8[16384]{0}', space=vmem, size = 0x4000, scoped, tag = 'output window, operand 0, single buffered']
    %7 = vsyncpa [#allocation3], 0
    %8 = vsyncpa [#allocation6], 0
    %9 = vsyncpa [#allocation4], 0
    // Predicated region
    $region2: #{tpu_custom_call.1} parent=1 // pred_check
      _
    $region3: #{tpu_custom_call.1} parent=1 // pred_check_branch
      %11 = sbr.rel (0) target = $region5
    $region4: #{tpu_custom_call.1} parent=1 // pred_region
      %s13 = ssub.s32 512, 512
      %14 = vsyncadd [#allocation3], %s13
      %s15 = sshll.u32 [#allocation2], 4
      %s16 = int_to_ptr.vmem [resolvable:$true] %s15
      %21 = dma.hbm_to_vmem [thread:$0]  %s0, 512, %s16, [#allocation3], 128, 128, 8
    $region5: #{tpu_custom_call.1} parent=1 // pred_fallthru
      _
    // Predicated region
    $region6: #{tpu_custom_call.1} parent=1 // pred_check
      _
    $region7: #{tpu_custom_call.1} parent=1 // pred_check_branch
      %23 = sbr.rel (0) target = $region9
    $region8: #{tpu_custom_call.1} parent=1 // pred_region
      %s25 = ssub.s32 256, 256
      %26 = vsyncadd [#allocation6], %s25
      %s27 = sshll.u32 [#allocation5], 4
      %s28 = int_to_ptr.vmem [resolvable:$true] %s27
      %33 = dma.hbm_to_vmem [thread:$0]  %s1, 256, %s28, [#allocation6], 128, 128, 8
    $region9: #{tpu_custom_call.1} parent=1 // pred_fallthru
      _
    // Predicated region
    $region10: #{tpu_custom_call.1} parent=1 // pred_check
      _
    $region11: #{tpu_custom_call.1} parent=1 // pred_check_branch
      %35 = sbr.rel (0) target = $region13
    $region12: #{tpu_custom_call.1} parent=1 // pred_region
      %36 = dma.done [#allocation3], 512
    $region13: #{tpu_custom_call.1} parent=1 // pred_fallthru
      _
    // Predicated region
    $region14: #{tpu_custom_call.1} parent=1 // pred_check
      _
    $region15: #{tpu_custom_call.1} parent=1 // pred_check_branch
      %38 = sbr.rel (0) target = $region17
    $region16: #{tpu_custom_call.1} parent=1 // pred_region
      %39 = dma.done [#allocation6], 256
    $region17: #{tpu_custom_call.1} parent=1 // pred_fallthru
      _
    %v40 = vld [vmem:[#allocation2] sm:$0xff]
    %v41 = vld [vmem:[#allocation2 + $0x8] sm:$0xff]
    %v42 = vld [vmem:[#allocation2 + $0x10] sm:$0xff]
    %v43 = vld [vmem:[#allocation2 + $0x18] sm:$0xff]
    %v44 = vld [vmem:[#allocation5] sm:$0xff]
    %v45 = vld [vmem:[#allocation5 + $0x8] sm:$0xff]
    %v46 = vadd.f32 %v40, %v44
    %v47 = vadd.f32 %v41, %v45
    %v48 = vadd.f32 %v42, %v44
    %v49 = vadd.f32 %v43, %v45
    %50 = vst [vmem:[#allocation7] sm:$0xff] %v46
    %51 = vst [vmem:[#allocation7 + $0x8] sm:$0xff] %v47
    %52 = vst [vmem:[#allocation7 + $0x10] sm:$0xff] %v48
    %53 = vst [vmem:[#allocation7 + $0x18] sm:$0xff] %v49
    // Predicated region
    $region18: #{tpu_custom_call.1} parent=1 // pred_check
      _
    $region19: #{tpu_custom_call.1} parent=1 // pred_check_branch
      %55 = sbr.rel (0) target = $region21
    $region20: #{tpu_custom_call.1} parent=1 // pred_region
      %s57 = ssub.s32 512, 512
      %58 = vsyncadd [#allocation4], %s57
      %s59 = sshll.u32 [#allocation7], 4
      %s60 = int_to_ptr.vmem [resolvable:$true] %s59
      %65 = dma.vmem_to_hbm [thread:$0]  %s60, 512, %s2, [#allocation4], 128, 128, 8
    $region21: #{tpu_custom_call.1} parent=1 // pred_fallthru
      _
    // Predicated region
    $region22: #{tpu_custom_call.1} parent=1 // pred_check
      _
    $region23: #{tpu_custom_call.1} parent=1 // pred_check_branch
      %67 = sbr.rel (0) target = $region25
    $region24: #{tpu_custom_call.1} parent=1 // pred_region
      %68 = dma.done [#allocation4], 512
    $region25: #{tpu_custom_call.1} parent=1 // pred_fallthru
      _
    %69 = vsyncpa [#allocation3], 1
    %70 = vsyncpa [#allocation6], 1
    %71 = vsyncpa [#allocation4], 1

</llo_original>
